<compile_context>
chip_gen: v6e
topology: v6e:2x2x1
jax: 0.10.0
libtpu: 0.0.40
codegen_flags: <defaults>
</compile_context>

<pallas_src>
import jax
import jax.numpy as jnp
from jax.experimental import pallas as pl
from jax.experimental.pallas import tpu as pltpu

_N_SEMS = 16  # max row DMAs in flight on the HBM->HBM path (deep enough for v7x)

# Per-array payload budget for the VMEM-staged path.  Worst case the pipeline
# double-buffers both the input and the output block, so 4 MiB payload means
# <= ~16 MiB of VMEM, safe within every generation's scoped default (and well
# inside v7x's 64 MiB physical VMEM).
_VMEM_GATHER_BUDGET_BYTES = 4 * 1024 * 1024


def _gather_vmem_kernel(perm_ref, x_ref, o_ref):
    """out[i] = x[perm[i]] with x/out resident in VMEM (one bulk DMA each way)."""
    B = o_ref.shape[0]
    # B is small and static; a fully unrolled loop of lane-dense row copies.
    for i in range(B):
        o_ref[i] = x_ref[perm_ref[i]]


def _gather_dma_kernel(perm_ref, x_hbm, o_hbm, sems):
    """out[i] = x[perm[i]] via direct HBM->HBM DMAs (up to _N_SEMS in flight)."""
    B = o_hbm.shape[0]
    n_slots = min(B, _N_SEMS)
    pending = [None] * n_slots
    # TODO(synk): for very large B switch to lax.fori_loop(unroll=4..8) with
    #             dynamic slot indexing to keep the instruction stream small.
    for i in range(B):
        slot = i % n_slots
        # Read the gather index from SMEM *before* any .wait(): waits break
        # SMEM sst->sld forwarding even for untouched addresses.
        idx = perm_ref[i]
        if pending[slot] is not None:
            # Retire the copy previously issued on this slot, using the actual
            # descriptor we started (no dummy same-size descriptor tricks).
            pending[slot].wait()
        cp = pltpu.make_async_copy(x_hbm.at[idx], o_hbm.at[i], sems.at[slot])
        cp.start()
        pending[slot] = cp
    # Drain: exactly one outstanding copy per used slot.
    for slot in range(n_slots):
        pending[slot].wait()


def label_shuffle(x, y, *, vmem_budget_bytes=_VMEM_GATHER_BUDGET_BYTES):
    """Reorder batch of x so samples appear grouped by label 0, 1, 2 (stable)."""
    B, C, H, W = x.shape
    chw = C * H * W
    itemsize = jnp.dtype(x.dtype).itemsize

    # Lane-dense per-sample view: (chw//128, 128) when divisible (free reshape
    # of contiguous NCHW); otherwise one contiguous (1, chw) row so every copy
    # is still a single descriptor regardless of lane divisibility.
    # TODO(synk): for the VMEM path with chw % 128 != 0 the writeback uses
    #             masked stores; padding the last dim to 128 would avoid that.
    if chw % 128 == 0:
        row_shape = (chw // 128, 128)
    else:
        row_shape = (1, chw)
    x_rows = x.reshape((B,) + row_shape)

    # Stable sort of labels == concat of per-class index lists for labels
    # 0, 1, 2.  This index computation is glue; the gather runs in the kernel.
    perm = jnp.argsort(y, stable=True).astype(jnp.int32)

    cost = pl.CostEstimate(
        flops=0, transcendentals=0, bytes_accessed=2 * B * chw * itemsize)

    total_bytes = B * chw * itemsize
    if total_bytes <= vmem_budget_bytes:
        # Small-sample path: one bulk HBM->VMEM copy, gather inside VMEM,
        # one contiguous VMEM->HBM writeback.
        out_rows = pl.pallas_call(
            _gather_vmem_kernel,
            out_shape=jax.ShapeDtypeStruct((B,) + row_shape, x.dtype),
            grid_spec=pltpu.PrefetchScalarGridSpec(
                num_scalar_prefetch=1,                      # perm -> SMEM
                grid=(1,),
                in_specs=[pl.BlockSpec((B,) + row_shape,
                                       lambda g, perm: (0, 0, 0))],
                out_specs=pl.BlockSpec((B,) + row_shape,
                                       lambda g, perm: (0, 0, 0)),
            ),
            compiler_params=pltpu.CompilerParams(
                dimension_semantics=("arbitrary",),
                vmem_limit_bytes=32 * 1024 * 1024),
            cost_estimate=cost,
        )(perm, x_rows)
    else:
        # Large-sample path: direct HBM->HBM row DMAs, no VMEM round trip.
        out_rows = pl.pallas_call(
            _gather_dma_kernel,
            out_shape=jax.ShapeDtypeStruct((B,) + row_shape, x.dtype),
            grid_spec=pltpu.PrefetchScalarGridSpec(
                num_scalar_prefetch=1,                          # perm -> SMEM
                grid=(1,),                                      # DMAs do the work
                in_specs=[pl.BlockSpec(memory_space=pl.ANY)],   # x stays in HBM
                out_specs=pl.BlockSpec(memory_space=pl.ANY),    # out stays in HBM
                scratch_shapes=[pltpu.SemaphoreType.DMA((_N_SEMS,))],
            ),
            compiler_params=pltpu.CompilerParams(
                dimension_semantics=("arbitrary",)),
            cost_estimate=cost,
        )(perm, x_rows)

    return out_rows.reshape(B, C, H, W)


if __name__ == "__main__":
    key = jax.random.PRNGKey(0)
    kx, ky = jax.random.split(key)

    B, C, H, W = 8, 4, 16, 16
    x = jax.random.normal(kx, (B, C, H, W), dtype=jnp.float32)
    y = jax.random.randint(ky, (B,), 0, 3, dtype=jnp.int32)

    # Reference: concatenation of per-class splits (stable within class).
    perm_idx = jnp.argsort(y, stable=True)
    ref = x[perm_idx]

    # Default dispatch (small payload -> VMEM-staged bulk gather).
    out = jax.block_until_ready(label_shuffle(x, y))
    assert out.shape == x.shape
    assert out.dtype == x.dtype
    assert jnp.array_equal(out, ref), "mismatch vs reference gather (VMEM path)"

    # Force the HBM->HBM per-row DMA path too (used for large samples).
    out_hbm = jax.block_until_ready(label_shuffle(x, y, vmem_budget_bytes=0))
    assert jnp.array_equal(out_hbm, ref), "mismatch vs reference gather (DMA path)"

    print("KERNEL_OK")
</pallas_src>

<mosaic_0001>
module attributes {stable_mosaic.version = 11 : i64} {
  func.func @_gather_vmem_kernel(%arg0: i32, %arg1: memref<8xi32, #tpu.memory_space<smem>>, %arg2: memref<8x8x128xf32, #tpu.memory_space<vmem>>, %arg3: memref<8x8x128xf32, #tpu.memory_space<vmem>>) attributes {dimension_semantics = [#tpu.dimension_semantics<arbitrary>], iteration_bounds = array<i64: 1>, scalar_prefetch = 1 : i64, scratch_operands = 0 : i64, tpu.core_type = #tpu.core_type<tc>, window_params = [{pipeline_mode = #tpu.pipeline_mode<synchronous>, transform_indices = @transform_0, window_bounds = array<i64: 8, 8, 128>}, {pipeline_mode = #tpu.pipeline_mode<synchronous>, transform_indices = @transform_1, window_bounds = array<i64: 8, 8, 128>}]} {
    %c0 = arith.constant 0 : index
    %0 = memref.load %arg1[%c0] : memref<8xi32, #tpu.memory_space<smem>>
    %1 = arith.index_cast %0 : i32 to index
    %c0_0 = arith.constant 0 : index
    %c0_1 = arith.constant 0 : index
    %2 = vector.load %arg2[%1, %c0_0, %c0_1] : memref<8x8x128xf32, #tpu.memory_space<vmem>>, vector<1x8x128xf32>
    %3 = vector.shape_cast %2 : vector<1x8x128xf32> to vector<8x128xf32>
    %c0_2 = arith.constant 0 : index
    %c0_3 = arith.constant 0 : index
    %c0_4 = arith.constant 0 : index
    %4 = vector.load %arg3[%c0_2, %c0_3, %c0_4] : memref<8x8x128xf32, #tpu.memory_space<vmem>>, vector<1x8x128xf32>
    %5 = vector.shape_cast %4 : vector<1x8x128xf32> to vector<8x128xf32>
    %6 = vector.shape_cast %3 : vector<8x128xf32> to vector<1x8x128xf32>
    tpu.vector_store %arg3[%c0_2, %c0_3, %c0_4], %6 {strides = array<i32>} : memref<8x8x128xf32, #tpu.memory_space<vmem>>, vector<1x8x128xf32>,
    %c1 = arith.constant 1 : index
    %7 = memref.load %arg1[%c1] : memref<8xi32, #tpu.memory_space<smem>>
    %8 = arith.index_cast %7 : i32 to index
    %c0_5 = arith.constant 0 : index
    %c0_6 = arith.constant 0 : index
    %9 = vector.load %arg2[%8, %c0_5, %c0_6] : memref<8x8x128xf32, #tpu.memory_space<vmem>>, vector<1x8x128xf32>
    %10 = vector.shape_cast %9 : vector<1x8x128xf32> to vector<8x128xf32>
    %c1_7 = arith.constant 1 : index
    %c0_8 = arith.constant 0 : index
    %c0_9 = arith.constant 0 : index
    %11 = vector.load %arg3[%c1_7, %c0_8, %c0_9] : memref<8x8x128xf32, #tpu.memory_space<vmem>>, vector<1x8x128xf32>
    %12 = vector.shape_cast %11 : vector<1x8x128xf32> to vector<8x128xf32>
    %13 = vector.shape_cast %10 : vector<8x128xf32> to vector<1x8x128xf32>
    tpu.vector_store %arg3[%c1_7, %c0_8, %c0_9], %13 {strides = array<i32>} : memref<8x8x128xf32, #tpu.memory_space<vmem>>, vector<1x8x128xf32>,
    %c2 = arith.constant 2 : index
    %14 = memref.load %arg1[%c2] : memref<8xi32, #tpu.memory_space<smem>>
    %15 = arith.index_cast %14 : i32 to index
    %c0_10 = arith.constant 0 : index
    %c0_11 = arith.constant 0 : index
    %16 = vector.load %arg2[%15, %c0_10, %c0_11] : memref<8x8x128xf32, #tpu.memory_space<vmem>>, vector<1x8x128xf32>
    %17 = vector.shape_cast %16 : vector<1x8x128xf32> to vector<8x128xf32>
    %c2_12 = arith.constant 2 : index
    %c0_13 = arith.constant 0 : index
    %c0_14 = arith.constant 0 : index
    %18 = vector.load %arg3[%c2_12, %c0_13, %c0_14] : memref<8x8x128xf32, #tpu.memory_space<vmem>>, vector<1x8x128xf32>
    %19 = vector.shape_cast %18 : vector<1x8x128xf32> to vector<8x128xf32>
    %20 = vector.shape_cast %17 : vector<8x128xf32> to vector<1x8x128xf32>
    tpu.vector_store %arg3[%c2_12, %c0_13, %c0_14], %20 {strides = array<i32>} : memref<8x8x128xf32, #tpu.memory_space<vmem>>, vector<1x8x128xf32>,
    %c3 = arith.constant 3 : index
    %21 = memref.load %arg1[%c3] : memref<8xi32, #tpu.memory_space<smem>>
    %22 = arith.index_cast %21 : i32 to index
    %c0_15 = arith.constant 0 : index
    %c0_16 = arith.constant 0 : index
    %23 = vector.load %arg2[%22, %c0_15, %c0_16] : memref<8x8x128xf32, #tpu.memory_space<vmem>>, vector<1x8x128xf32>
    %24 = vector.shape_cast %23 : vector<1x8x128xf32> to vector<8x128xf32>
    %c3_17 = arith.constant 3 : index
    %c0_18 = arith.constant 0 : index
    %c0_19 = arith.constant 0 : index
    %25 = vector.load %arg3[%c3_17, %c0_18, %c0_19] : memref<8x8x128xf32, #tpu.memory_space<vmem>>, vector<1x8x128xf32>
    %26 = vector.shape_cast %25 : vector<1x8x128xf32> to vector<8x128xf32>
    %27 = vector.shape_cast %24 : vector<8x128xf32> to vector<1x8x128xf32>
    tpu.vector_store %arg3[%c3_17, %c0_18, %c0_19], %27 {strides = array<i32>} : memref<8x8x128xf32, #tpu.memory_space<vmem>>, vector<1x8x128xf32>,
    %c4 = arith.constant 4 : index
    %28 = memref.load %arg1[%c4] : memref<8xi32, #tpu.memory_space<smem>>
    %29 = arith.index_cast %28 : i32 to index
    %c0_20 = arith.constant 0 : index
    %c0_21 = arith.constant 0 : index
    %30 = vector.load %arg2[%29, %c0_20, %c0_21] : memref<8x8x128xf32, #tpu.memory_space<vmem>>, vector<1x8x128xf32>
    %31 = vector.shape_cast %30 : vector<1x8x128xf32> to vector<8x128xf32>
    %c4_22 = arith.constant 4 : index
    %c0_23 = arith.constant 0 : index
    %c0_24 = arith.constant 0 : index
    %32 = vector.load %arg3[%c4_22, %c0_23, %c0_24] : memref<8x8x128xf32, #tpu.memory_space<vmem>>, vector<1x8x128xf32>
    %33 = vector.shape_cast %32 : vector<1x8x128xf32> to vector<8x128xf32>
    %34 = vector.shape_cast %31 : vector<8x128xf32> to vector<1x8x128xf32>
    tpu.vector_store %arg3[%c4_22, %c0_23, %c0_24], %34 {strides = array<i32>} : memref<8x8x128xf32, #tpu.memory_space<vmem>>, vector<1x8x128xf32>,
    %c5 = arith.constant 5 : index
    %35 = memref.load %arg1[%c5] : memref<8xi32, #tpu.memory_space<smem>>
    %36 = arith.index_cast %35 : i32 to index
    %c0_25 = arith.constant 0 : index
    %c0_26 = arith.constant 0 : index
    %37 = vector.load %arg2[%36, %c0_25, %c0_26] : memref<8x8x128xf32, #tpu.memory_space<vmem>>, vector<1x8x128xf32>
    %38 = vector.shape_cast %37 : vector<1x8x128xf32> to vector<8x128xf32>
    %c5_27 = arith.constant 5 : index
    %c0_28 = arith.constant 0 : index
    %c0_29 = arith.constant 0 : index
    %39 = vector.load %arg3[%c5_27, %c0_28, %c0_29] : memref<8x8x128xf32, #tpu.memory_space<vmem>>, vector<1x8x128xf32>
    %40 = vector.shape_cast %39 : vector<1x8x128xf32> to vector<8x128xf32>
    %41 = vector.shape_cast %38 : vector<8x128xf32> to vector<1x8x128xf32>
    tpu.vector_store %arg3[%c5_27, %c0_28, %c0_29], %41 {strides = array<i32>} : memref<8x8x128xf32, #tpu.memory_space<vmem>>, vector<1x8x128xf32>,
    %c6 = arith.constant 6 : index
    %42 = memref.load %arg1[%c6] : memref<8xi32, #tpu.memory_space<smem>>
    %43 = arith.index_cast %42 : i32 to index
    %c0_30 = arith.constant 0 : index
    %c0_31 = arith.constant 0 : index
    %44 = vector.load %arg2[%43, %c0_30, %c0_31] : memref<8x8x128xf32, #tpu.memory_space<vmem>>, vector<1x8x128xf32>
    %45 = vector.shape_cast %44 : vector<1x8x128xf32> to vector<8x128xf32>
    %c6_32 = arith.constant 6 : index
    %c0_33 = arith.constant 0 : index
    %c0_34 = arith.constant 0 : index
    %46 = vector.load %arg3[%c6_32, %c0_33, %c0_34] : memref<8x8x128xf32, #tpu.memory_space<vmem>>, vector<1x8x128xf32>
    %47 = vector.shape_cast %46 : vector<1x8x128xf32> to vector<8x128xf32>
    %48 = vector.shape_cast %45 : vector<8x128xf32> to vector<1x8x128xf32>
    tpu.vector_store %arg3[%c6_32, %c0_33, %c0_34], %48 {strides = array<i32>} : memref<8x8x128xf32, #tpu.memory_space<vmem>>, vector<1x8x128xf32>,
    %c7 = arith.constant 7 : index
    %49 = memref.load %arg1[%c7] : memref<8xi32, #tpu.memory_space<smem>>
    %50 = arith.index_cast %49 : i32 to index
    %c0_35 = arith.constant 0 : index
    %c0_36 = arith.constant 0 : index
    %51 = vector.load %arg2[%50, %c0_35, %c0_36] : memref<8x8x128xf32, #tpu.memory_space<vmem>>, vector<1x8x128xf32>
    %52 = vector.shape_cast %51 : vector<1x8x128xf32> to vector<8x128xf32>
    %c7_37 = arith.constant 7 : index
    %c0_38 = arith.constant 0 : index
    %c0_39 = arith.constant 0 : index
    %53 = vector.load %arg3[%c7_37, %c0_38, %c0_39] : memref<8x8x128xf32, #tpu.memory_space<vmem>>, vector<1x8x128xf32>
    %54 = vector.shape_cast %53 : vector<1x8x128xf32> to vector<8x128xf32>
    %55 = vector.shape_cast %52 : vector<8x128xf32> to vector<1x8x128xf32>
    tpu.vector_store %arg3[%c7_37, %c0_38, %c0_39], %55 {strides = array<i32>} : memref<8x8x128xf32, #tpu.memory_space<vmem>>, vector<1x8x128xf32>,
    return
  }
  func.func @transform_0(%arg0: i32, %arg1: memref<8xi32, #tpu.memory_space<smem>>) -> (i32, i32, i32) {
    %c0_i32 = arith.constant 0 : i32
    %c0_i32_0 = arith.constant 0 : i32
    %c0_i32_1 = arith.constant 0 : i32
    %c0_i32_2 = arith.constant 0 : i32
    return %c0_i32, %c0_i32_0, %c0_i32_1 : i32, i32, i32
  }
  func.func @transform_1(%arg0: i32, %arg1: memref<8xi32, #tpu.memory_space<smem>>) -> (i32, i32, i32) {
    %c0_i32 = arith.constant 0 : i32
    %c0_i32_0 = arith.constant 0 : i32
    %c0_i32_1 = arith.constant 0 : i32
    %c0_i32_2 = arith.constant 0 : i32
    return %c0_i32, %c0_i32_0, %c0_i32_1 : i32, i32, i32
  }
}

</mosaic_0001>

<llo_original>
// kernel: tpu_custom_call.1
$region0: #{tpu_custom_call.1}
  #allocation0 [shape = 'u32[]', space=smem, size = 0x4, offset = 0x4, fixed_abs, tag = 'smem constant byte address 0x4 - core index']
  #allocation1 [shape = 'u32[144,128]{1,0:T(1,128)}', space=vmem, size = 0x12000, scoped, tag = 'internal scratch']
  #allocation2 [shape = 's32[1]{0}', space=sflag, size = 0x4, scoped, tag = 'scoped memory for tpu_custom_call.1']
  #allocation3 [shape = 'u8[512]{0}', space=smem, size = 0x200, scoped, tag = 'prefetched SMEM operand 0']
  %s0 = inlined_call_operand.hbm [shape: s32[8], index: 0, kind: input, shape index: {}]
  %s1 = inlined_call_operand.hbm [shape: f32[8,8,128], index: 1, kind: input, shape index: {}]
  %s2 = inlined_call_operand.hbm [shape: f32[8,8,128], index: 2, kind: output, shape index: {}]
  %s3 = sld [smem:[#allocation0]]
  $region18: #{tpu_custom_call.1} parent=0
    _
  %s5 = ssub.s32 1, %s3
  %s6 = scalar_select 0, %s5, %s3
  %8 = dma.hbm_to_smem %s0, 16, [#allocation3], [#allocation2]
  %9 = dma.done [#allocation2], 16
  %10 = sfence
  $region1: #{tpu_custom_call.1} parent=0
    #allocation4 [shape = 'u8[32768]{0}', space=vmem, size = 0x8000, scoped, tag = 'input window, operand 1, single buffered']
    #allocation5 [shape = 's32[1]{0}', space=sflag, size = 0x4, scoped, tag = 'scoped memory for tpu_custom_call.1']
    #allocation6 [shape = 's32[1]{0}', space=sflag, size = 0x4, scoped, tag = 'scoped memory for tpu_custom_call.1']
    #allocation7 [shape = 'u8[32768]{0}', space=vmem, size = 0x8000, scoped, tag = 'output window, operand 0, single buffered']
    %11 = vsyncpa [#allocation5], 0
    %12 = vsyncpa [#allocation6], 0
    // Predicated region
    $region2: #{tpu_custom_call.1} parent=1 // pred_check
      _
    $region3: #{tpu_custom_call.1} parent=1 // pred_check_branch
      %14 = sbr.rel (0) target = $region5
    $region4: #{tpu_custom_call.1} parent=1 // pred_region
      %s16 = ssub.s32 1024, 1024
      %17 = vsyncadd [#allocation5], %s16
      %s18 = sshll.u32 [#allocation4], 4
      %s19 = int_to_ptr.vmem [resolvable:$true] %s18
      %24 = dma.hbm_to_vmem [thread:$0]  %s1, 1024, %s19, [#allocation5], 128, 128, 8
    $region5: #{tpu_custom_call.1} parent=1 // pred_fallthru
      _
    // Predicated region
    $region6: #{tpu_custom_call.1} parent=1 // pred_check
      _
    $region7: #{tpu_custom_call.1} parent=1 // pred_check_branch
      %26 = sbr.rel (0) target = $region9
    $region8: #{tpu_custom_call.1} parent=1 // pred_region
      %27 = dma.done [#allocation5], 1024
    $region9: #{tpu_custom_call.1} parent=1 // pred_fallthru
      _
    %s28 = sld [smem:[#allocation3]]
    %s29 = smul.u32 %s28, 8
    %s30 = scalar_lea.vmem [#allocation4], %s29
    %v31 = vld [vmem:[%s30] sm:$0xff]
    %32 = vst [vmem:[#allocation7] sm:$0xff] %v31
    %s33 = sld [smem:[#allocation3 + $0x1]]
    %s34 = smul.u32 %s33, 8
    %s35 = scalar_lea.vmem [#allocation4], %s34
    %v36 = vld [vmem:[%s35] sm:$0xff]
    %s37 = scalar_lea.vmem [#allocation7], 8
    %38 = vst [vmem:[%s37] sm:$0xff] %v36
    %s39 = sld [smem:[#allocation3 + $0x2]]
    %s40 = smul.u32 %s39, 8
    %s41 = scalar_lea.vmem [#allocation4], %s40
    %v42 = vld [vmem:[%s41] sm:$0xff]
    %s43 = scalar_lea.vmem [#allocation7], 16
    %44 = vst [vmem:[%s43] sm:$0xff] %v42
    %s45 = sld [smem:[#allocation3 + $0x3]]
    %s46 = smul.u32 %s45, 8
    %s47 = scalar_lea.vmem [#allocation4], %s46
    %v48 = vld [vmem:[%s47] sm:$0xff]
    %s49 = scalar_lea.vmem [#allocation7], 24
    %50 = vst [vmem:[%s49] sm:$0xff] %v48
    %s51 = sld [smem:[#allocation3 + $0x4]]
    %s52 = smul.u32 %s51, 8
    %s53 = scalar_lea.vmem [#allocation4], %s52
    %v54 = vld [vmem:[%s53] sm:$0xff]
    %s55 = scalar_lea.vmem [#allocation7], 32
    %56 = vst [vmem:[%s55] sm:$0xff] %v54
    %s57 = sld [smem:[#allocation3 + $0x5]]
    %s58 = smul.u32 %s57, 8
    %s59 = scalar_lea.vmem [#allocation4], %s58
    %v60 = vld [vmem:[%s59] sm:$0xff]
    %s61 = scalar_lea.vmem [#allocation7], 40
    %62 = vst [vmem:[%s61] sm:$0xff] %v60
    %s63 = sld [smem:[#allocation3 + $0x6]]
    %s64 = smul.u32 %s63, 8
    %s65 = scalar_lea.vmem [#allocation4], %s64
    %v66 = vld [vmem:[%s65] sm:$0xff]
    %s67 = scalar_lea.vmem [#allocation7], 48
    %68 = vst [vmem:[%s67] sm:$0xff] %v66
    %s69 = sld [smem:[#allocation3 + $0x7]]
    %s70 = smul.u32 %s69, 8
    %s71 = scalar_lea.vmem [#allocation4], %s70
    %v72 = vld [vmem:[%s71] sm:$0xff]
    %s73 = scalar_lea.vmem [#allocation7], 56
    %74 = vst [vmem:[%s73] sm:$0xff] %v72
    // Predicated region
    $region10: #{tpu_custom_call.1} parent=1 // pred_check
      _
    $region11: #{tpu_custom_call.1} parent=1 // pred_check_branch
      %76 = sbr.rel (0) target = $region13
    $region12: #{tpu_custom_call.1} parent=1 // pred_region
      %s78 = ssub.s32 1024, 1024
      %79 = vsyncadd [#allocation6], %s78
      %s80 = sshll.u32 [#allocation7], 4
      %s81 = int_to_ptr.vmem [resolvable:$true] %s80
      %86 = dma.vmem_to_hbm [thread:$0]  %s81, 1024, %s2, [#allocation6], 128, 128, 8
    $region13: #{tpu_custom_call.1} parent=1 // pred_fallthru
      _
    // Predicated region
    $region14: #{tpu_custom_call.1} parent=1 // pred_check
      _
    $region15: #{tpu_custom_call.1} parent=1 // pred_check_branch
      %88 = sbr.rel (0) target = $region17
    $region16: #{tpu_custom_call.1} parent=1 // pred_region
      %89 = dma.done [#allocation6], 1024
    $region17: #{tpu_custom_call.1} parent=1 // pred_fallthru
      _
    %90 = vsyncpa [#allocation5], 1
    %91 = vsyncpa [#allocation6], 1

</llo_original>
